<compile_context>
chip_gen: v6e
topology: v6e:2x2x1
jax: 0.10.0
libtpu: 0.0.40
codegen_flags: <defaults>
</compile_context>

<pallas_src>
import functools

import jax
import jax.numpy as jnp
from jax.experimental import pallas as pl
from jax.experimental.pallas import tpu as pltpu


# ----------------------------- Pallas kernel --------------------------------
def _embed_pe_kernel(ids_ref, emb_ref, pe_ref, out_ref, *, scale):
    """One grid step = `tile` consecutive tokens of a single batch row.

    ids_ref : (tile, 1)   int32 token ids for this tile
    emb_ref : (V, D)      full embedding table, VMEM-resident across the grid
    pe_ref  : (tile, D)   pe rows for these positions (pipelined block)
    out_ref : (tile, D)   output rows (sublane/lane dense)
    """
    tile = out_ref.shape[0]
    v = emb_ref.shape[0]

    # ---- token-embedding gather (one-hot @ table on the idle MXU) ----------
    ids = ids_ref[...]                                               # (tile, 1)
    onehot = (ids == jax.lax.broadcasted_iota(jnp.int32, (tile, v), 1))
    rows = jnp.dot(
        onehot.astype(jnp.float32),
        emb_ref[...].astype(jnp.float32),        # exact row selection
        preferred_element_type=jnp.float32,
        precision=jax.lax.Precision.HIGHEST,
    )                                                                # (tile, D)

    # ---- fused scale + positional-encoding add (VPU, hidden under DMA) -----
    out_ref[...] = (rows * scale + pe_ref[...].astype(jnp.float32)
                    ).astype(out_ref.dtype)


def _pick_tile(seq_pad, target):
    """Largest multiple of 8 that divides seq_pad and is <= target."""
    best = 8
    d = 8
    limit = min(seq_pad, target)
    while d <= limit:
        if seq_pad % d == 0:
            best = d
        d += 8
    return best


def embedding_forward(ids, emb_weight, pe, pos=0, *, target_tile=512):
    """ids: (S, B) int token ids (seq-first); emb_weight: (V, D); pe: (max_len, D).

    Returns (S, B, D) float32 = emb_weight[ids] * sqrt(D) + pe[pos:pos+S, None, :].
    """
    S, B = ids.shape
    V, D = emb_weight.shape
    max_len = pe.shape[0]
    scale = float(D) ** 0.5

    # Sublane-align per-sequence length; padded rows are computed and discarded.
    seq_pad = -(-S // 8) * 8
    assert pos + seq_pad <= max_len, "pos + (padded) seq length exceeds pe table"

    # Batch-major token order so each tile covers contiguous positions of one row.
    ids_bm = jnp.transpose(ids.astype(jnp.int32))                    # (B, S)
    if seq_pad != S:
        ids_bm = jnp.pad(ids_bm, ((0, 0), (0, seq_pad - S)))
    n_tokens = B * seq_pad
    flat_ids = ids_bm.reshape(n_tokens, 1)

    # Positional-encoding window cut out once on the XLA side (no in-kernel
    # dynamic slicing; the kernel sees clean pipelined (tile, D) blocks).
    pe_seq = jax.lax.dynamic_slice(pe, (pos, 0), (seq_pad, D))       # (seq_pad, D)

    tile = _pick_tile(seq_pad, target_tile)
    n_seq_tiles = seq_pad // tile
    grid = (B, n_seq_tiles)

    # VMEM budget: resident emb table (x2 buffer allocation) + pipelined
    # ids / pe / out blocks + matmul intermediates.  Guard the fast path.
    table_bytes = 2 * V * D * emb_weight.dtype.itemsize
    io_bytes = (2 * tile * 4                       # ids blocks
                + 2 * tile * D * pe.dtype.itemsize # pe blocks
                + 2 * tile * D * 4                 # out blocks
                + tile * max(V, D) * 4 * 2)        # onehot / rows intermediates
    assert table_bytes + io_bytes < (40 << 20), (
        "embedding table too large for the VMEM-resident path")
    vmem_limit = min(max(table_bytes + io_bytes + (4 << 20), 16 << 20), 48 << 20)

    grid_spec = pltpu.PrefetchScalarGridSpec(
        num_scalar_prefetch=0,
        grid=grid,
        in_specs=[
            # token-id tile: batch-major flat index = b * n_seq_tiles + s
            pl.BlockSpec((tile, 1), lambda b, s: (b * n_seq_tiles + s, 0)),
            # resident embedding table (constant index_map -> fetched once)
            pl.BlockSpec((V, D), lambda b, s: (0, 0)),
            # pe rows for this seq-tile (same block for every batch row)
            pl.BlockSpec((tile, D), lambda b, s: (s, 0)),
        ],
        out_specs=pl.BlockSpec((tile, D), lambda b, s: (b * n_seq_tiles + s, 0)),
    )

    out_flat = pl.pallas_call(
        functools.partial(_embed_pe_kernel, scale=scale),
        out_shape=jax.ShapeDtypeStruct((n_tokens, D), jnp.float32),
        grid_spec=grid_spec,
        compiler_params=pltpu.CompilerParams(
            dimension_semantics=("parallel", "parallel"),  # independent tiles
            vmem_limit_bytes=vmem_limit,
        ),
    )(flat_ids, emb_weight, pe_seq)

    out = out_flat.reshape(B, seq_pad, D)[:, :S, :]                  # (B, S, D)
    # TODO(synk): training-mode dropout not implemented (identity / eval mode).
    return jnp.transpose(out, (1, 0, 2))                             # (S, B, D)


# --------------------------- parameter construction --------------------------
def make_params(vocab_size, dim, padding_idx, max_len=1024, seed=0):
    key = jax.random.PRNGKey(seed)
    # nn.init.uniform_(emb.weight, -0.01, 0.01); padding_idx row is zero.
    emb_w = jax.random.uniform(
        key, (vocab_size, dim), minval=-0.01, maxval=0.01, dtype=jnp.float32
    )
    emb_w = emb_w.at[padding_idx].set(0.0)

    # Sinusoidal positional encoding, identical to the PyTorch buffer
    # (max_len, 1, dim) -> stored here as (max_len, dim).
    position = jnp.arange(max_len, dtype=jnp.float32)[:, None]       # (max_len, 1)
    div_term = jnp.exp(
        jnp.arange(0, dim, 2, dtype=jnp.float32) * (-jnp.log(10000.0) / dim)
    )                                                                 # (dim/2,)
    pe = jnp.zeros((max_len, dim), dtype=jnp.float32)
    pe = pe.at[:, 0::2].set(jnp.sin(position * div_term))
    pe = pe.at[:, 1::2].set(jnp.cos(position * div_term))
    return emb_w, pe


# ----------------------------------- main ------------------------------------
if __name__ == "__main__":
    vocab_size = 32
    dim = 128          # even, lane-aligned
    padding_idx = 0
    seq_len = 8
    batch = 2
    pos = 0

    emb_w, pe = make_params(vocab_size, dim, padding_idx)

    key = jax.random.PRNGKey(0)
    ids = jax.random.randint(key, (seq_len, batch), 0, vocab_size, dtype=jnp.int32)

    out = embedding_forward(ids, emb_w, pe, pos=pos)
    out = jax.block_until_ready(out)

    # Pure-JAX reference (dropout = identity at inference).
    ref = emb_w[ids] * (dim ** 0.5) + pe[pos:pos + seq_len][:, None, :]
    assert out.shape == (seq_len, batch, dim)
    assert jnp.allclose(out, ref, atol=1e-4, rtol=1e-4), float(
        jnp.max(jnp.abs(out - ref)))

    print("KERNEL_OK")
</pallas_src>

<mosaic_0001>
module attributes {stable_mosaic.version = 11 : i64} {
  func.func @_embed_pe_kernel(%arg0: i32, %arg1: i32, %arg2: memref<8x1xi32, #tpu.memory_space<vmem>>, %arg3: memref<32x128xf32, #tpu.memory_space<vmem>>, %arg4: memref<8x128xf32, #tpu.memory_space<vmem>>, %arg5: memref<8x128xf32, #tpu.memory_space<vmem>>) attributes {dimension_semantics = [#tpu.dimension_semantics<parallel>, #tpu.dimension_semantics<parallel>], iteration_bounds = array<i64: 2, 1>, scalar_prefetch = 0 : i64, scratch_operands = 0 : i64, tpu.core_type = #tpu.core_type<tc>, window_params = [{transform_indices = @transform_0, window_bounds = array<i64: 8, 1>}, {pipeline_mode = #tpu.pipeline_mode<synchronous>, transform_indices = @transform_1, window_bounds = array<i64: 32, 128>}, {transform_indices = @transform_2, window_bounds = array<i64: 8, 128>}, {transform_indices = @transform_3, window_bounds = array<i64: 8, 128>}]} {
    %c0 = arith.constant 0 : index
    %c0_0 = arith.constant 0 : index
    %0 = vector.load %arg2[%c0, %c0_0] : memref<8x1xi32, #tpu.memory_space<vmem>>, vector<8x1xi32>
    %1 = tpu.iota {dimensions = array<i32: 1>} : vector<8x32xi32>
    %2 = vector.broadcast %0 : vector<8x1xi32> to vector<8x32xi32>
    %3 = arith.cmpi eq, %2, %1 : vector<8x32xi32>
    %4 = arith.extui %3 : vector<8x32xi1> to vector<8x32xi32>
    %5 = arith.sitofp %4 : vector<8x32xi32> to vector<8x32xf32>
    %c0_1 = arith.constant 0 : index
    %c0_2 = arith.constant 0 : index
    %6 = vector.load %arg3[%c0_1, %c0_2] : memref<32x128xf32, #tpu.memory_space<vmem>>, vector<32x128xf32>
    %cst = arith.constant dense<0.000000e+00> : vector<8x128xf32>
    %7 = tpu.matmul %5, %6, %cst {dimension_numbers = #tpu.dot_dimension_numbers<[1], [0], [0], [1], [0, 0, 1, 1], [], []>, precision = #tpu.contract_precision<fp32>} : vector<8x32xf32>, vector<32x128xf32>, vector<8x128xf32> -> vector<8x128xf32>
    %cst_3 = arith.constant 11.3137083 : f32
    %8 = vector.broadcast %cst_3 : f32 to vector<8x128xf32>
    %9 = arith.mulf %7, %8 : vector<8x128xf32>
    %c0_4 = arith.constant 0 : index
    %c0_5 = arith.constant 0 : index
    %10 = vector.load %arg4[%c0_4, %c0_5] : memref<8x128xf32, #tpu.memory_space<vmem>>, vector<8x128xf32>
    %11 = arith.addf %9, %10 : vector<8x128xf32>
    %c0_6 = arith.constant 0 : index
    %c0_7 = arith.constant 0 : index
    %12 = vector.load %arg5[%c0_6, %c0_7] : memref<8x128xf32, #tpu.memory_space<vmem>>, vector<8x128xf32>
    tpu.vector_store %arg5[%c0_6, %c0_7], %11 {strides = array<i32>} : memref<8x128xf32, #tpu.memory_space<vmem>>, vector<8x128xf32>,
    return
  }
  func.func @transform_0(%arg0: i32, %arg1: i32) -> (i32, i32) {
    %c1_i32 = arith.constant 1 : i32
    %0 = arith.muli %arg0, %c1_i32 : i32
    %1 = arith.addi %0, %arg1 : i32
    %c0_i32 = arith.constant 0 : i32
    %c0_i32_0 = arith.constant 0 : i32
    return %1, %c0_i32 : i32, i32
  }
  func.func @transform_1(%arg0: i32, %arg1: i32) -> (i32, i32) {
    %c0_i32 = arith.constant 0 : i32
    %c0_i32_0 = arith.constant 0 : i32
    %c0_i32_1 = arith.constant 0 : i32
    return %c0_i32, %c0_i32_0 : i32, i32
  }
  func.func @transform_2(%arg0: i32, %arg1: i32) -> (i32, i32) {
    %c0_i32 = arith.constant 0 : i32
    %c0_i32_0 = arith.constant 0 : i32
    return %arg1, %c0_i32 : i32, i32
  }
  func.func @transform_3(%arg0: i32, %arg1: i32) -> (i32, i32) {
    %c1_i32 = arith.constant 1 : i32
    %0 = arith.muli %arg0, %c1_i32 : i32
    %1 = arith.addi %0, %arg1 : i32
    %c0_i32 = arith.constant 0 : i32
    %c0_i32_0 = arith.constant 0 : i32
    return %1, %c0_i32 : i32, i32
  }
}

</mosaic_0001>

<llo_original>
// kernel: tpu_custom_call.1
$region0: #{tpu_custom_call.1}
  #allocation0 [shape = 'u32[]', space=smem, size = 0x4, offset = 0x4, fixed_abs, tag = 'smem constant byte address 0x4 - core index']
  #allocation1 [shape = 'u32[144,128]{1,0:T(1,128)}', space=vmem, size = 0x12000, scoped, tag = 'internal scratch']
  %s0 = inlined_call_operand.vmem [shape: s32[16,1], index: 0, kind: input, shape index: {}]
  %s1 = inlined_call_operand.hbm [shape: f32[32,128], index: 1, kind: input, shape index: {}]
  %s2 = inlined_call_operand.vmem [shape: f32[8,128], index: 2, kind: input, shape index: {}]
  %s3 = inlined_call_operand.hbm [shape: f32[16,128], index: 3, kind: output, shape index: {}]
  %s4 = sld [smem:[#allocation0]]
  $region49: #{tpu_custom_call.1} parent=0
    _
  %s6 = ssub.s32 1, %s4
  %s7 = scalar_select 0, %s6, %s4
  $region1: #{tpu_custom_call.1} parent=0
    #allocation2 [shape = 'u8[16384]{0}', space=vmem, size = 0x4000, scoped, tag = 'input window, operand 1, single buffered']
    #allocation3 [shape = 's32[2]{0}', space=sflag, size = 0x8, scoped, tag = 'scoped memory for tpu_custom_call.1']
    #allocation4 [shape = 's32[2]{0}', space=sflag, size = 0x8, scoped, tag = 'scoped memory for tpu_custom_call.1']
    #allocation5 [shape = 'u8[8192]{0}', space=vmem, size = 0x2000, scoped, tag = 'output window, operand 0']
    %8 = vsyncpa [#allocation3], 0
    %9 = vsyncpa [#allocation4], 0
    %s10 = scalar_lea.sflag [#allocation4], 1
    %11 = vsyncpa %s10, 0
    loop: start=0, step=1, limit=4
    $region2: #{tpu_custom_call.1} parent=1 // loop_pre_header
      _
    $region3: #{tpu_custom_call.1} parent=1 // loop_header
      %s13 = sphi 0, %s17
      %p14 = scmp.ge.s32.totalorder %s13, 4
      %s20 = sphi 0, %s32
      %s21 = sphi 0, %s28
      %s22 = sphi 0, %s20
      %s23 = sphi 0, %s21
      %s24 = sphi 0, %s22
      %s25 = sphi 0, %s23
      %s37 = sphi 0, %s39
      %s40 = sphi 0, %s37
      %s41 = sphi 0, %s40
      %s57 = sphi 0, %s41
      %s61 = sphi 0, %s61
      %s63 = sphi 0, %s61
      %s64 = sphi 0, %s63
      %s78 = sphi 0, %s64
      %s84 = sphi 0, %s86
      %s87 = sphi 0, %s84
      %s88 = sphi 0, %s87
      %s104 = sphi 0, %s88
      %s112 = sphi 0, %s114
      %s115 = sphi 0, %s112
      %s116 = sphi 0, %s115
      %s132 = sphi 0, %s116
    $region4: #{tpu_custom_call.1} parent=1 // loop_header_branch
      %16 = sbr.rel (%p14) target = $region8
    $region5: #{tpu_custom_call.1} parent=1 // loop_body
      %s18 = ssub.s32 %s13, 1
      %s19 = ssub.s32 %s13, 2
      %s26 = sadd.s32 1, %s21
      %p27 = scmp.ge.s32.totalorder %s26, 1
      %s28 = scalar_select %p27, 0, %s26
      %s29 = sadd.s32 1, %s20
      %s30 = scalar_select %p27, %s29, %s20
      %p31 = scmp.ge.s32.totalorder %s30, 2
      %s32 = scalar_select %p31, 0, %s30
      %s33 = sadd.s32 %s20, %s21
      %s34 = sadd.s32 %s32, %s28
      %s35 = ssub.s32 %s33, %s34
      %p36 = scmp.eq.s32.totalorder %s35, 0
      %s38 = sadd.s32 %s37, 1
      %s39 = scalar_select %p36, %s37, %s38
      %p42 = pneg %p36
      %p43 = scmp.eq.s32.totalorder %s13, 1
      %p44 = por %p42, %p43
      %p45 = scmp.ne.s32.totalorder %s37, %s40
      %p46 = scmp.eq.s32.totalorder %s13, 0
      %p47 = por %p45, %p46
      %p48 = scmp.ne.s32.totalorder %s37, %s40
      %p49 = scmp.eq.s32.totalorder %s18, 1
      %p50 = por %p48, %p49
      %p51 = scmp.ne.s32.totalorder %s40, %s41
      %p52 = scmp.eq.s32.totalorder %s18, 0
      %p53 = por %p51, %p52
      %p54 = scmp.ne.s32.totalorder %s40, %s41
      %p55 = scmp.eq.s32.totalorder %s19, 1
      %p56 = por %p54, %p55
      %p58 = scmp.ne.s32.totalorder %s41, %s57
      %p59 = scmp.eq.s32.totalorder %s19, 0
      %p60 = por %p58, %p59
      %s62 = sadd.s32 %s61, 1
      %p65 = scmp.eq.s32.totalorder %s13, 1
      %p66 = scmp.ne.s32.totalorder %s61, %s63
      %p67 = scmp.eq.s32.totalorder %s13, 0
      %p68 = por %p66, %p67
      %p69 = scmp.ne.s32.totalorder %s61, %s63
      %p70 = scmp.eq.s32.totalorder %s18, 1
      %p71 = por %p69, %p70
      %p72 = scmp.ne.s32.totalorder %s63, %s64
      %p73 = scmp.eq.s32.totalorder %s18, 0
      %p74 = por %p72, %p73
      %p75 = scmp.ne.s32.totalorder %s63, %s64
      %p76 = scmp.eq.s32.totalorder %s19, 1
      %p77 = por %p75, %p76
      %p79 = scmp.ne.s32.totalorder %s64, %s78
      %p80 = scmp.eq.s32.totalorder %s19, 0
      %p81 = por %p79, %p80
      %s82 = ssub.s32 %s21, %s28
      %p83 = scmp.eq.s32.totalorder %s82, 0
      %s85 = sadd.s32 %s84, 1
      %s86 = scalar_select %p83, %s84, %s85
      %p89 = pneg %p83
      %p90 = scmp.eq.s32.totalorder %s13, 1
      %p91 = por %p89, %p90
      %p92 = scmp.ne.s32.totalorder %s84, %s87
      %p93 = scmp.eq.s32.totalorder %s13, 0
      %p94 = por %p92, %p93
      %p95 = scmp.ne.s32.totalorder %s84, %s87
      %p96 = scmp.eq.s32.totalorder %s18, 1
      %p97 = por %p95, %p96
      %p98 = scmp.ne.s32.totalorder %s87, %s88
      %p99 = scmp.eq.s32.totalorder %s18, 0
      %p100 = por %p98, %p99
      %p101 = scmp.ne.s32.totalorder %s87, %s88
      %p102 = scmp.eq.s32.totalorder %s19, 1
      %p103 = por %p101, %p102
      %p105 = scmp.ne.s32.totalorder %s88, %s104
      %p106 = scmp.eq.s32.totalorder %s19, 0
      %p107 = por %p105, %p106
      %s108 = sadd.s32 %s20, %s21
      %s109 = sadd.s32 %s32, %s28
      %s110 = ssub.s32 %s108, %s109
      %p111 = scmp.eq.s32.totalorder %s110, 0
      %s113 = sadd.s32 %s112, 1
      %s114 = scalar_select %p111, %s112, %s113
      %p117 = pneg %p111
      %p118 = scmp.eq.s32.totalorder %s13, 1
      %p119 = por %p117, %p118
      %p120 = scmp.ne.s32.totalorder %s112, %s115
      %p121 = scmp.eq.s32.totalorder %s13, 0
      %p122 = por %p120, %p121
      %p123 = scmp.ne.s32.totalorder %s112, %s115
      %p124 = scmp.eq.s32.totalorder %s18, 1
      %p125 = por %p123, %p124
      %p126 = scmp.ne.s32.totalorder %s115, %s116
      %p127 = scmp.eq.s32.totalorder %s18, 0
      %p128 = por %p126, %p127
      %p129 = scmp.ne.s32.totalorder %s115, %s116
      %p130 = scmp.eq.s32.totalorder %s19, 1
      %p131 = por %p129, %p130
      %p133 = scmp.ne.s32.totalorder %s116, %s132
      %p134 = scmp.eq.s32.totalorder %s19, 0
      %p135 = por %p133, %p134
      %p136 = scmp.le.s32.totalorder 1, %s13
      %p137 = scmp.lt.s32.totalorder %s13, 3
      %p138 = pnand %p136, %p137
      %p139 = pneg %p138
      // Predicated region
      $region9: #{tpu_custom_call.1} parent=5 // pred_check
        _
      $region10: #{tpu_custom_call.1} parent=5 // pred_check_branch
        %141 = sbr.rel (%p138) target = $region12
      $region11: #{tpu_custom_call.1} parent=5 // pred_region
        %s142 = ssub.s32 %s13, 1
        // Predicated region
        $region13: #{tpu_custom_call.1} parent=11 // pred_check
          %p143 = pneg %p74
        $region14: #{tpu_custom_call.1} parent=11 // pred_check_branch
          %145 = sbr.rel (%p143) target = $region16
        $region15: #{tpu_custom_call.1} parent=11 // pred_region
          %s147 = ssub.s32 512, 512
          %148 = vsyncadd [#allocation3], %s147
          %s149 = sshll.u32 [#allocation2], 4
          %s150 = int_to_ptr.vmem [resolvable:$true] %s149
          %155 = dma.hbm_to_vmem [thread:$0]  %s1, 512, %s150, [#allocation3], 128, 128, 8
        $region16: #{tpu_custom_call.1} parent=11 // pred_fallthru
          _
        // Predicated region
        $region17: #{tpu_custom_call.1} parent=11 // pred_check
          %p156 = pneg %p100
        $region18: #{tpu_custom_call.1} parent=11 // pred_check_branch
          %158 = sbr.rel (%p156) target = $region20
        $region19: #{tpu_custom_call.1} parent=11 // pred_region
          %p159 = scmp.lt.s32.totalorder %s23, 0
          %s160 = scalar_select %p159, %s23, 0
          %s161 = smul.addr %s160, 8
          %s162 = scalar_lea.vmem %s2, %s161
        $region20: #{tpu_custom_call.1} parent=11 // pred_fallthru
          _
      $region12: #{tpu_custom_call.1} parent=5 // pred_fallthru
        _
      %p163 = scmp.lt.s32.totalorder %s13, 2
      // Predicated region
      $region21: #{tpu_custom_call.1} parent=5 // pred_check
        %p164 = pneg %p163
      $region22: #{tpu_custom_call.1} parent=5 // pred_check_branch
        %166 = sbr.rel (%p164) target = $region24
      $region23: #{tpu_custom_call.1} parent=5 // pred_region
        // Predicated region
        $region25: #{tpu_custom_call.1} parent=23 // pred_check
          %p167 = pneg %p47
        $region26: #{tpu_custom_call.1} parent=23 // pred_check_branch
          %169 = sbr.rel (%p167) target = $region28
        $region27: #{tpu_custom_call.1} parent=23 // pred_region
          %s170 = sadd.s32 %s20, %s21
          %p171 = scmp.lt.s32.totalorder %s170, 1
          %s172 = scalar_select %p171, %s170, 1
          %s173 = smul.addr %s172, 8
          %s174 = scalar_lea.vmem %s0, %s173
          %s175 = sadd.s32 %s20, %s21
        $region28: #{tpu_custom_call.1} parent=23 // pred_fallthru
          _
      $region24: #{tpu_custom_call.1} parent=5 // pred_fallthru
        _
      %p176 = scmp.le.s32.totalorder 1, %s13
      %p177 = scmp.lt.s32.totalorder %s13, 3
      %p178 = pnand %p176, %p177
      %p179 = pneg %p178
      // Predicated region
      $region29: #{tpu_custom_call.1} parent=5 // pred_check
        _
      $region30: #{tpu_custom_call.1} parent=5 // pred_check_branch
        %181 = sbr.rel (%p178) target = $region32
      $region31: #{tpu_custom_call.1} parent=5 // pred_region
        %s182 = ssub.s32 %s13, 1
        // Predicated region
        $region33: #{tpu_custom_call.1} parent=31 // pred_check
          %p183 = pneg %p74
        $region34: #{tpu_custom_call.1} parent=31 // pred_check_branch
          %185 = sbr.rel (%p183) target = $region36
        $region35: #{tpu_custom_call.1} parent=31 // pred_region
          %186 = dma.done [#allocation3], 512
        $region36: #{tpu_custom_call.1} parent=31 // pred_fallthru
          _
        %s187 = sadd.s32 %s22, %s23
        %p188 = scmp.lt.s32.totalorder %s187, 1
        %s189 = scalar_select %p188, %s187, 1
        %s190 = smul.addr %s189, 8
        %s191 = scalar_lea.vmem %s0, %s190
        %p192 = pneg %p53
        %p193 = pneg %p50
        %p194 = pneg %p74
        %p195 = pneg %p71
        %p196 = scmp.lt.s32.totalorder %s23, 0
        %s197 = scalar_select %p196, %s23, 0
        %s198 = smul.addr %s197, 8
        %s199 = scalar_lea.vmem %s2, %s198
        %p200 = pneg %p100
        %p201 = pneg %p97
        %p202 = pneg %p128
        %p203 = pneg %p125
        %s204 = sand.u32 %s115, 1
        %s205 = scalar_lea.sflag [#allocation4], %s204
        %s206 = sand.u32 %s115, 1
        %s207 = smul.addr %s206, 8
        %s208 = scalar_lea.vmem [#allocation5], %s207
        %s209 = sadd.s32 %s22, %s23
        %p210 = scmp.lt.s32.totalorder %s209, 1
        %s211 = scalar_select %p210, %s209, 1
        %s212 = smul.addr %s211, 8
        %s213 = scalar_lea.vmem %s0, %s212
        %s214 = sadd.s32 %s22, %s23
        %p215 = scmp.lt.s32.totalorder %s23, 0
        %s216 = scalar_select %p215, %s23, 0
        %s217 = smul.addr %s216, 8
        %s218 = scalar_lea.vmem %s2, %s217
        %s219 = sadd.s32 %s22, %s23
        %v220 = vld [vmem:[%s213] sm:$0xff]
        %v221 = vlaneseq
        %v222 = vand.u32 %v221, 127
        %223 = vset.pattern.permute.xlu0 0
        %224 = vperm.xlu0 %223, %v220
        %v225 = vpop.permute.xlu0 %224
        %vm226 = vcmp.eq.s32.totalorder %v225, %v222
        %v227 = vsel %vm226, 1, 0
        %v228 = vcvt.s32.f32 %v227
        %v229 = vld [vmem:[#allocation2] sm:$0xff]
        %v230 = vld [vmem:[#allocation2 + $0x8] sm:$0xff]
        %v231 = vld [vmem:[#allocation2 + $0x10] sm:$0xff]
        %v232 = vld [vmem:[#allocation2 + $0x18] sm:$0xff]
        %vm233 = vcmask 261120
        %v235 = vsel %vm233, %v228, 0
        %237 = vmatprep.subr.mxu0 0.0
        %238 = vmatpush1.msra.mxu0 0.0
        %239 = vmatprep.subr.mxu0 0.0
        %240 = vmatpush1.msra.mxu0 0.0
        %241 = vmatprep.subr.mxu0 0.0
        %242 = vmatpush1.msra.mxu0 0.0
        %243 = vmatprep.subr.mxu0 0.0
        %244 = vmatpush1.msra.mxu0 0.0
        %245 = vmatprep.subr.mxu0 0.0
        %246 = vmatpush1.msra.mxu0 0.0
        %247 = vmatprep.subr.mxu0 0.0
        %248 = vmatpush1.msra.mxu0 0.0
        %249 = vmatprep.subr.mxu0 0.0
        %250 = vmatpush1.msra.mxu0 0.0
        %251 = vmatprep.subr.mxu0 0.0
        %252 = vmatpush1.msra.mxu0 0.0
        %253 = vmatprep.subr.mxu0 0.0
        %254 = vmatpush1.msra.mxu0 0.0
        %255 = vmatprep.subr.mxu0 0.0
        %256 = vmatpush1.msra.mxu0 0.0
        %257 = vmatprep.subr.mxu0 0.0
        %258 = vmatpush1.msra.mxu0 0.0
        %259 = vmatprep.subr.mxu0 0.0
        %260 = vmatpush1.msra.mxu0 0.0
        %261 = vmatprep.subr.mxu0 0.0
        %v262 = vand.u32 %v232, 4294901760
        %263 = vmatpush1.msra.mxu0 %v262
        %264 = vmatprep.subr.mxu0 0.0
        %v265 = vand.u32 %v231, 4294901760
        %266 = vmatpush1.msra.mxu0 %v265
        %267 = vmatprep.subr.mxu0 0.0
        %v268 = vand.u32 %v230, 4294901760
        %269 = vmatpush1.msra.mxu0 %v268
        %270 = vmatprep.subr.mxu0 0.0
        %v271 = vand.u32 %v229, 4294901760
        %272 = vmatpush1.msra.mxu0 %v271
        %273 = vmatprep.subr.mxu0 0.0
        %274 = vmatpush2.msra.mxu0 0.0
        %275 = vmatprep.subr.mxu0 0.0
        %276 = vmatpush2.msra.mxu0 0.0
        %277 = vmatprep.subr.mxu0 0.0
        %278 = vmatpush2.msra.mxu0 0.0
        %279 = vmatprep.subr.mxu0 0.0
        %280 = vmatpush2.msra.mxu0 0.0
        %281 = vmatprep.subr.mxu0 0.0
        %282 = vmatpush2.msra.mxu0 0.0
        %283 = vmatprep.subr.mxu0 0.0
        %284 = vmatpush2.msra.mxu0 0.0
        %285 = vmatprep.subr.mxu0 0.0
        %286 = vmatpush2.msra.mxu0 0.0
        %287 = vmatprep.subr.mxu0 0.0
        %288 = vmatpush2.msra.mxu0 0.0
        %289 = vmatprep.subr.mxu0 0.0
        %290 = vmatpush2.msra.mxu0 0.0
        %291 = vmatprep.subr.mxu0 0.0
        %292 = vmatpush2.msra.mxu0 0.0
        %293 = vmatprep.subr.mxu0 0.0
        %294 = vmatpush2.msra.mxu0 0.0
        %295 = vmatprep.subr.mxu0 0.0
        %296 = vmatpush2.msra.mxu0 0.0
        %297 = vmatprep.subr.mxu0 0.0
        %298 = vmatpush2.msra.mxu0 0.0
        %299 = vmatprep.subr.mxu0 0.0
        %300 = vmatpush2.msra.mxu0 0.0
        %301 = vmatprep.subr.mxu0 0.0
        %302 = vmatpush2.msra.mxu0 0.0
        %303 = vmatprep.subr.mxu0 0.0
        %304 = vmatpush2.msra.mxu0 0.0
        %305 = vmatprep.mubr.f32.mxu0 0.0
        %v306 = vand.u32 %v235, 4294901760
        %v307 = vsub.f32 %v235, %v306
        %v308 = vand.u32 %v307, 4294901760
        %v309 = vsub.f32 %v307, %v308
        %v310 = vand.u32 %v309, 4294901760
        %311 = vmatmul.mubr.f32.gmra.mxu0 %v310
        %v312 = vpop.f32.mrf.mxu0
        %v313 = vadd.f32 0.0, %v312
        %v314 = vpop.f32.mrf.mxu0
        %315 = vdwg.mxu0
        %316 = vmatprep.subr.mxu0 0.0
        %317 = vmatpush1.msra.mxu0 0.0
        %318 = vmatprep.subr.mxu0 0.0
        %319 = vmatpush1.msra.mxu0 0.0
        %320 = vmatprep.subr.mxu0 0.0
        %321 = vmatpush1.msra.mxu0 0.0
        %322 = vmatprep.subr.mxu0 0.0
        %323 = vmatpush1.msra.mxu0 0.0
        %324 = vmatprep.subr.mxu0 0.0
        %325 = vmatpush1.msra.mxu0 0.0
        %326 = vmatprep.subr.mxu0 0.0
        %327 = vmatpush1.msra.mxu0 0.0
        %328 = vmatprep.subr.mxu0 0.0
        %329 = vmatpush1.msra.mxu0 0.0
        %330 = vmatprep.subr.mxu0 0.0
        %331 = vmatpush1.msra.mxu0 0.0
        %332 = vmatprep.subr.mxu0 0.0
        %333 = vmatpush1.msra.mxu0 0.0
        %334 = vmatprep.subr.mxu0 0.0
        %335 = vmatpush1.msra.mxu0 0.0
        %336 = vmatprep.subr.mxu0 0.0
        %337 = vmatpush1.msra.mxu0 0.0
        %338 = vmatprep.subr.mxu0 0.0
        %339 = vmatpush1.msra.mxu0 0.0
        %340 = vmatprep.subr.mxu0 0.0
        %v341 = vand.u32 %v232, 4294901760
        %v342 = vsub.f32 %v232, %v341
        %v343 = vand.u32 %v342, 4294901760
        %v344 = vsub.f32 %v342, %v343
        %v345 = vand.u32 %v344, 4294901760
        %346 = vmatpush1.msra.mxu0 %v345
        %347 = vmatprep.subr.mxu0 0.0
        %v348 = vand.u32 %v231, 4294901760
        %v349 = vsub.f32 %v231, %v348
        %v350 = vand.u32 %v349, 4294901760
        %v351 = vsub.f32 %v349, %v350
        %v352 = vand.u32 %v351, 4294901760
        %353 = vmatpush1.msra.mxu0 %v352
        %354 = vmatprep.subr.mxu0 0.0
        %v355 = vand.u32 %v230, 4294901760
        %v356 = vsub.f32 %v230, %v355
        %v357 = vand.u32 %v356, 4294901760
        %v358 = vsub.f32 %v356, %v357
        %v359 = vand.u32 %v358, 4294901760
        %360 = vmatpush1.msra.mxu0 %v359
        %361 = vmatprep.subr.mxu0 0.0
        %v362 = vand.u32 %v229, 4294901760
        %v363 = vsub.f32 %v229, %v362
        %v364 = vand.u32 %v363, 4294901760
        %v365 = vsub.f32 %v363, %v364
        %v366 = vand.u32 %v365, 4294901760
        %367 = vmatpush1.msra.mxu0 %v366
        %368 = vmatprep.subr.mxu0 0.0
        %369 = vmatpush2.msra.mxu0 0.0
        %370 = vmatprep.subr.mxu0 0.0
        %371 = vmatpush2.msra.mxu0 0.0
        %372 = vmatprep.subr.mxu0 0.0
        %373 = vmatpush2.msra.mxu0 0.0
        %374 = vmatprep.subr.mxu0 0.0
        %375 = vmatpush2.msra.mxu0 0.0
        %376 = vmatprep.subr.mxu0 0.0
        %377 = vmatpush2.msra.mxu0 0.0
        %378 = vmatprep.subr.mxu0 0.0
        %379 = vmatpush2.msra.mxu0 0.0
        %380 = vmatprep.subr.mxu0 0.0
        %381 = vmatpush2.msra.mxu0 0.0
        %382 = vmatprep.subr.mxu0 0.0
        %383 = vmatpush2.msra.mxu0 0.0
        %384 = vmatprep.subr.mxu0 0.0
        %385 = vmatpush2.msra.mxu0 0.0
        %386 = vmatprep.subr.mxu0 0.0
        %387 = vmatpush2.msra.mxu0 0.0
        %388 = vmatprep.subr.mxu0 0.0
        %389 = vmatpush2.msra.mxu0 0.0
        %390 = vmatprep.subr.mxu0 0.0
        %391 = vmatpush2.msra.mxu0 0.0
        %392 = vmatprep.subr.mxu0 0.0
        %393 = vmatpush2.msra.mxu0 0.0
        %394 = vmatprep.subr.mxu0 0.0
        %395 = vmatpush2.msra.mxu0 0.0
        %396 = vmatprep.subr.mxu0 0.0
        %397 = vmatpush2.msra.mxu0 0.0
        %398 = vmatprep.subr.mxu0 0.0
        %399 = vmatpush2.msra.mxu0 0.0
        %400 = vmatprep.mubr.f32.mxu0 0.0
        %v401 = vand.u32 %v235, 4294901760
        %402 = vmatmul.mubr.f32.gmra.mxu0 %v401
        %v403 = vpop.f32.mrf.mxu0
        %v404 = vadd.f32 %v313, %v403
        %v405 = vpop.f32.mrf.mxu0
        %406 = vdwg.mxu0
        %407 = vmatprep.subr.mxu0 0.0
        %408 = vmatpush1.msra.mxu0 0.0
        %409 = vmatprep.subr.mxu0 0.0
        %410 = vmatpush1.msra.mxu0 0.0
        %411 = vmatprep.subr.mxu0 0.0
        %412 = vmatpush1.msra.mxu0 0.0
        %413 = vmatprep.subr.mxu0 0.0
        %414 = vmatpush1.msra.mxu0 0.0
        %415 = vmatprep.subr.mxu0 0.0
        %416 = vmatpush1.msra.mxu0 0.0
        %417 = vmatprep.subr.mxu0 0.0
        %418 = vmatpush1.msra.mxu0 0.0
        %419 = vmatprep.subr.mxu0 0.0
        %420 = vmatpush1.msra.mxu0 0.0
        %421 = vmatprep.subr.mxu0 0.0
        %422 = vmatpush1.msra.mxu0 0.0
        %423 = vmatprep.subr.mxu0 0.0
        %424 = vmatpush1.msra.mxu0 0.0
        %425 = vmatprep.subr.mxu0 0.0
        %426 = vmatpush1.msra.mxu0 0.0
        %427 = vmatprep.subr.mxu0 0.0
        %428 = vmatpush1.msra.mxu0 0.0
        %429 = vmatprep.subr.mxu0 0.0
        %430 = vmatpush1.msra.mxu0 0.0
        %431 = vmatprep.subr.mxu0 0.0
        %v432 = vand.u32 %v232, 4294901760
        %v433 = vsub.f32 %v232, %v432
        %434 = vmatpush1.msra.mxu0 %v433
        %435 = vmatprep.subr.mxu0 0.0
        %v436 = vand.u32 %v231, 4294901760
        %v437 = vsub.f32 %v231, %v436
        %438 = vmatpush1.msra.mxu0 %v437
        %439 = vmatprep.subr.mxu0 0.0
        %v440 = vand.u32 %v230, 4294901760
        %v441 = vsub.f32 %v230, %v440
        %442 = vmatpush1.msra.mxu0 %v441
        %443 = vmatprep.subr.mxu0 0.0
        %v444 = vand.u32 %v229, 4294901760
        %v445 = vsub.f32 %v229, %v444
        %446 = vmatpush1.msra.mxu0 %v445
        %447 = vmatprep.subr.mxu0 0.0
        %448 = vmatpush2.msra.mxu0 0.0
        %449 = vmatprep.subr.mxu0 0.0
        %450 = vmatpush2.msra.mxu0 0.0
        %451 = vmatprep.subr.mxu0 0.0
        %452 = vmatpush2.msra.mxu0 0.0
        %453 = vmatprep.subr.mxu0 0.0
        %454 = vmatpush2.msra.mxu0 0.0
        %455 = vmatprep.subr.mxu0 0.0
        %456 = vmatpush2.msra.mxu0 0.0
        %457 = vmatprep.subr.mxu0 0.0
        %458 = vmatpush2.msra.mxu0 0.0
        %459 = vmatprep.subr.mxu0 0.0
        %460 = vmatpush2.msra.mxu0 0.0
        %461 = vmatprep.subr.mxu0 0.0
        %462 = vmatpush2.msra.mxu0 0.0
        %463 = vmatprep.subr.mxu0 0.0
        %464 = vmatpush2.msra.mxu0 0.0
        %465 = vmatprep.subr.mxu0 0.0
        %466 = vmatpush2.msra.mxu0 0.0
        %467 = vmatprep.subr.mxu0 0.0
        %468 = vmatpush2.msra.mxu0 0.0
        %469 = vmatprep.subr.mxu0 0.0
        %470 = vmatpush2.msra.mxu0 0.0
        %471 = vmatprep.subr.mxu0 0.0
        %472 = vmatpush2.msra.mxu0 0.0
        %473 = vmatprep.subr.mxu0 0.0
        %474 = vmatpush2.msra.mxu0 0.0
        %475 = vmatprep.subr.mxu0 0.0
        %476 = vmatpush2.msra.mxu0 0.0
        %477 = vmatprep.subr.mxu0 0.0
        %478 = vmatpush2.msra.mxu0 0.0
        %479 = vmatprep.mubr.f32.mxu0 0.0
        %v480 = vand.u32 %v235, 4294901760
        %v481 = vsub.f32 %v235, %v480
        %482 = vmatmul.mubr.f32.gmra.mxu0 %v481
        %v483 = vpop.f32.mrf.mxu0
        %v484 = vadd.f32 %v404, %v483
        %v485 = vpop.f32.mrf.mxu0
        %486 = vdwg.mxu0
        %487 = vmatprep.subr.mxu0 0.0
        %488 = vmatpush1.msra.mxu0 0.0
        %489 = vmatprep.subr.mxu0 0.0
        %490 = vmatpush1.msra.mxu0 0.0
        %491 = vmatprep.subr.mxu0 0.0
        %492 = vmatpush1.msra.mxu0 0.0
        %493 = vmatprep.subr.mxu0 0.0
        %494 = vmatpush1.msra.mxu0 0.0
        %495 = vmatprep.subr.mxu0 0.0
        %496 = vmatpush1.msra.mxu0 0.0
        %497 = vmatprep.subr.mxu0 0.0
        %498 = vmatpush1.msra.mxu0 0.0
        %499 = vmatprep.subr.mxu0 0.0
        %500 = vmatpush1.msra.mxu0 0.0
        %501 = vmatprep.subr.mxu0 0.0
        %502 = vmatpush1.msra.mxu0 0.0
        %503 = vmatprep.subr.mxu0 0.0
        %504 = vmatpush1.msra.mxu0 0.0
        %505 = vmatprep.subr.mxu0 0.0
        %506 = vmatpush1.msra.mxu0 0.0
        %507 = vmatprep.subr.mxu0 0.0
        %508 = vmatpush1.msra.mxu0 0.0
        %509 = vmatprep.subr.mxu0 0.0
        %510 = vmatpush1.msra.mxu0 0.0
        %511 = vmatprep.subr.mxu0 0.0
        %v512 = vand.u32 %v232, 4294901760
        %513 = vmatpush1.msra.mxu0 %v512
        %514 = vmatprep.subr.mxu0 0.0
        %v515 = vand.u32 %v231, 4294901760
        %516 = vmatpush1.msra.mxu0 %v515
        %517 = vmatprep.subr.mxu0 0.0
        %v518 = vand.u32 %v230, 4294901760
        %519 = vmatpush1.msra.mxu0 %v518
        %520 = vmatprep.subr.mxu0 0.0
        %v521 = vand.u32 %v229, 4294901760
        %522 = vmatpush1.msra.mxu0 %v521
        %523 = vmatprep.subr.mxu0 0.0
        %524 = vmatpush2.msra.mxu0 0.0
        %525 = vmatprep.subr.mxu0 0.0
        %526 = vmatpush2.msra.mxu0 0.0
        %527 = vmatprep.subr.mxu0 0.0
        %528 = vmatpush2.msra.mxu0 0.0
        %529 = vmatprep.subr.mxu0 0.0
        %530 = vmatpush2.msra.mxu0 0.0
        %531 = vmatprep.subr.mxu0 0.0
        %532 = vmatpush2.msra.mxu0 0.0
        %533 = vmatprep.subr.mxu0 0.0
        %534 = vmatpush2.msra.mxu0 0.0
        %535 = vmatprep.subr.mxu0 0.0
        %536 = vmatpush2.msra.mxu0 0.0
        %537 = vmatprep.subr.mxu0 0.0
        %538 = vmatpush2.msra.mxu0 0.0
        %539 = vmatprep.subr.mxu0 0.0
        %540 = vmatpush2.msra.mxu0 0.0
        %541 = vmatprep.subr.mxu0 0.0
        %542 = vmatpush2.msra.mxu0 0.0
        %543 = vmatprep.subr.mxu0 0.0
        %544 = vmatpush2.msra.mxu0 0.0
        %545 = vmatprep.subr.mxu0 0.0
        %546 = vmatpush2.msra.mxu0 0.0
        %547 = vmatprep.subr.mxu0 0.0
        %548 = vmatpush2.msra.mxu0 0.0
        %549 = vmatprep.subr.mxu0 0.0
        %550 = vmatpush2.msra.mxu0 0.0
        %551 = vmatprep.subr.mxu0 0.0
        %552 = vmatpush2.msra.mxu0 0.0
        %553 = vmatprep.subr.mxu0 0.0
        %554 = vmatpush2.msra.mxu0 0.0
        %555 = vmatprep.mubr.f32.mxu0 0.0
        %v556 = vand.u32 %v235, 4294901760
        %v557 = vsub.f32 %v235, %v556
        %v558 = vand.u32 %v557, 4294901760
        %559 = vmatmul.mubr.f32.gmra.mxu0 %v558
        %v560 = vpop.f32.mrf.mxu0
        %v561 = vadd.f32 %v484, %v560
        %v562 = vpop.f32.mrf.mxu0
        %563 = vdwg.mxu0
        %564 = vmatprep.subr.mxu0 0.0
        %565 = vmatpush1.msra.mxu0 0.0
        %566 = vmatprep.subr.mxu0 0.0
        %567 = vmatpush1.msra.mxu0 0.0
        %568 = vmatprep.subr.mxu0 0.0
        %569 = vmatpush1.msra.mxu0 0.0
        %570 = vmatprep.subr.mxu0 0.0
        %571 = vmatpush1.msra.mxu0 0.0
        %572 = vmatprep.subr.mxu0 0.0
        %573 = vmatpush1.msra.mxu0 0.0
        %574 = vmatprep.subr.mxu0 0.0
        %575 = vmatpush1.msra.mxu0 0.0
        %576 = vmatprep.subr.mxu0 0.0
        %577 = vmatpush1.msra.mxu0 0.0
        %578 = vmatprep.subr.mxu0 0.0
        %579 = vmatpush1.msra.mxu0 0.0
        %580 = vmatprep.subr.mxu0 0.0
        %581 = vmatpush1.msra.mxu0 0.0
        %582 = vmatprep.subr.mxu0 0.0
        %583 = vmatpush1.msra.mxu0 0.0
        %584 = vmatprep.subr.mxu0 0.0
        %585 = vmatpush1.msra.mxu0 0.0
        %586 = vmatprep.subr.mxu0 0.0
        %587 = vmatpush1.msra.mxu0 0.0
        %588 = vmatprep.subr.mxu0 0.0
        %v589 = vand.u32 %v232, 4294901760
        %v590 = vsub.f32 %v232, %v589
        %v591 = vand.u32 %v590, 4294901760
        %592 = vmatpush1.msra.mxu0 %v591
        %593 = vmatprep.subr.mxu0 0.0
        %v594 = vand.u32 %v231, 4294901760
        %v595 = vsub.f32 %v231, %v594
        %v596 = vand.u32 %v595, 4294901760
        %597 = vmatpush1.msra.mxu0 %v596
        %598 = vmatprep.subr.mxu0 0.0
        %v599 = vand.u32 %v230, 4294901760
        %v600 = vsub.f32 %v230, %v599
        %v601 = vand.u32 %v600, 4294901760
        %602 = vmatpush1.msra.mxu0 %v601
        %603 = vmatprep.subr.mxu0 0.0
        %v604 = vand.u32 %v229, 4294901760
        %v605 = vsub.f32 %v229, %v604
        %v606 = vand.u32 %v605, 4294901760
        %607 = vmatpush1.msra.mxu0 %v606
        %608 = vmatprep.subr.mxu0 0.0
        %609 = vmatpush2.msra.mxu0 0.0
        %610 = vmatprep.subr.mxu0 0.0
        %611 = vmatpush2.msra.mxu0 0.0
        %612 = vmatprep.subr.mxu0 0.0
        %613 = vmatpush2.msra.mxu0 0.0
        %614 = vmatprep.subr.mxu0 0.0
        %615 = vmatpush2.msra.mxu0 0.0
        %616 = vmatprep.subr.mxu0 0.0
        %617 = vmatpush2.msra.mxu0 0.0
        %618 = vmatprep.subr.mxu0 0.0
        %619 = vmatpush2.msra.mxu0 0.0
        %620 = vmatprep.subr.mxu0 0.0
        %621 = vmatpush2.msra.mxu0 0.0
        %622 = vmatprep.subr.mxu0 0.0
        %623 = vmatpush2.msra.mxu0 0.0
        %624 = vmatprep.subr.mxu0 0.0
        %625 = vmatpush2.msra.mxu0 0.0
        %626 = vmatprep.subr.mxu0 0.0
        %627 = vmatpush2.msra.mxu0 0.0
        %628 = vmatprep.subr.mxu0 0.0
        %629 = vmatpush2.msra.mxu0 0.0
        %630 = vmatprep.subr.mxu0 0.0
        %631 = vmatpush2.msra.mxu0 0.0
        %632 = vmatprep.subr.mxu0 0.0
        %633 = vmatpush2.msra.mxu0 0.0
        %634 = vmatprep.subr.mxu0 0.0
        %635 = vmatpush2.msra.mxu0 0.0
        %636 = vmatprep.subr.mxu0 0.0
        %637 = vmatpush2.msra.mxu0 0.0
        %638 = vmatprep.subr.mxu0 0.0
        %639 = vmatpush2.msra.mxu0 0.0
        %640 = vmatprep.mubr.f32.mxu0 0.0
        %v641 = vand.u32 %v235, 4294901760
        %642 = vmatmul.mubr.f32.gmra.mxu0 %v641
        %v643 = vpop.f32.mrf.mxu0
        %v644 = vadd.f32 %v561, %v643
        %v645 = vpop.f32.mrf.mxu0
        %646 = vdwg.mxu0
        %647 = vmatprep.subr.mxu0 0.0
        %648 = vmatpush1.msra.mxu0 0.0
        %649 = vmatprep.subr.mxu0 0.0
        %650 = vmatpush1.msra.mxu0 0.0
        %651 = vmatprep.subr.mxu0 0.0
        %652 = vmatpush1.msra.mxu0 0.0
        %653 = vmatprep.subr.mxu0 0.0
        %654 = vmatpush1.msra.mxu0 0.0
        %655 = vmatprep.subr.mxu0 0.0
        %656 = vmatpush1.msra.mxu0 0.0
        %657 = vmatprep.subr.mxu0 0.0
        %658 = vmatpush1.msra.mxu0 0.0
        %659 = vmatprep.subr.mxu0 0.0
        %660 = vmatpush1.msra.mxu0 0.0
        %661 = vmatprep.subr.mxu0 0.0
        %662 = vmatpush1.msra.mxu0 0.0
        %663 = vmatprep.subr.mxu0 0.0
        %664 = vmatpush1.msra.mxu0 0.0
        %665 = vmatprep.subr.mxu0 0.0
        %666 = vmatpush1.msra.mxu0 0.0
        %667 = vmatprep.subr.mxu0 0.0
        %668 = vmatpush1.msra.mxu0 0.0
        %669 = vmatprep.subr.mxu0 0.0
        %670 = vmatpush1.msra.mxu0 0.0
        %671 = vmatprep.subr.mxu0 0.0
        %v672 = vand.u32 %v232, 4294901760
        %673 = vmatpush1.msra.mxu0 %v672
        %674 = vmatprep.subr.mxu0 0.0
        %v675 = vand.u32 %v231, 4294901760
        %676 = vmatpush1.msra.mxu0 %v675
        %677 = vmatprep.subr.mxu0 0.0
        %v678 = vand.u32 %v230, 4294901760
        %679 = vmatpush1.msra.mxu0 %v678
        %680 = vmatprep.subr.mxu0 0.0
        %v681 = vand.u32 %v229, 4294901760
        %682 = vmatpush1.msra.mxu0 %v681
        %683 = vmatprep.subr.mxu0 0.0
        %684 = vmatpush2.msra.mxu0 0.0
        %685 = vmatprep.subr.mxu0 0.0
        %686 = vmatpush2.msra.mxu0 0.0
        %687 = vmatprep.subr.mxu0 0.0
        %688 = vmatpush2.msra.mxu0 0.0
        %689 = vmatprep.subr.mxu0 0.0
        %690 = vmatpush2.msra.mxu0 0.0
        %691 = vmatprep.subr.mxu0 0.0
        %692 = vmatpush2.msra.mxu0 0.0
        %693 = vmatprep.subr.mxu0 0.0
        %694 = vmatpush2.msra.mxu0 0.0
        %695 = vmatprep.subr.mxu0 0.0
        %696 = vmatpush2.msra.mxu0 0.0
        %697 = vmatprep.subr.mxu0 0.0
        %698 = vmatpush2.msra.mxu0 0.0
        %699 = vmatprep.subr.mxu0 0.0
        %700 = vmatpush2.msra.mxu0 0.0
        %701 = vmatprep.subr.mxu0 0.0
        %702 = vmatpush2.msra.mxu0 0.0
        %703 = vmatprep.subr.mxu0 0.0
        %704 = vmatpush2.msra.mxu0 0.0
        %705 = vmatprep.subr.mxu0 0.0
        %706 = vmatpush2.msra.mxu0 0.0
        %707 = vmatprep.subr.mxu0 0.0
        %708 = vmatpush2.msra.mxu0 0.0
        %709 = vmatprep.subr.mxu0 0.0
        %710 = vmatpush2.msra.mxu0 0.0
        %711 = vmatprep.subr.mxu0 0.0
        %712 = vmatpush2.msra.mxu0 0.0
        %713 = vmatprep.subr.mxu0 0.0
        %714 = vmatpush2.msra.mxu0 0.0
        %715 = vmatprep.mubr.f32.mxu0 0.0
        %v716 = vand.u32 %v235, 4294901760
        %717 = vmatmul.mubr.f32.gmra.mxu0 %v716
        %v718 = vpop.f32.mrf.mxu0
        %v719 = vadd.f32 %v644, %v718
        %v720 = vpop.f32.mrf.mxu0
        %721 = vdwg.mxu0
        %v722 = vmul.f32 %v719, 11.313708
        %v723 = vld [vmem:[%s218] sm:$0xff]
        %v724 = vadd.f32 %v722, %v723
        %725 = vst [vmem:[%s208] sm:$0xff] %v724
        %s726 = sand.u32 %s115, 1
        %s727 = scalar_lea.sflag [#allocation4], %s726
        %s728 = sand.u32 %s115, 1
        %s729 = smul.addr %s728, 8
        %s730 = scalar_lea.vmem [#allocation5], %s729
        // Predicated region
        $region37: #{tpu_custom_call.1} parent=31 // pred_check
          %p731 = pneg %p125
        $region38: #{tpu_custom_call.1} parent=31 // pred_check_branch
          %733 = sbr.rel (%p731) target = $region40
        $region39: #{tpu_custom_call.1} parent=31 // pred_region
          %s734 = sadd.s32 %s22, %s23
          %s736 = ssub.s32 128, 128
          %737 = vsyncadd %s727, %s736
          %s738 = smul.addr %s734, 128
          %s739 = scalar_lea.hbm %s3, %s738
          %s741 = sshll.u32 %s730, 4
          %s742 = int_to_ptr.vmem [resolvable:$true] %s741
          %744 = dma.vmem_to_hbm [thread:$0]  %s742, 128, %s739, %s727
        $region40: #{tpu_custom_call.1} parent=31 // pred_fallthru
          _
      $region32: #{tpu_custom_call.1} parent=5 // pred_fallthru
        _
      %p745 = scmp.le.s32.totalorder 2, %s13
      // Predicated region
      $region41: #{tpu_custom_call.1} parent=5 // pred_check
        %p746 = pneg %p745
      $region42: #{tpu_custom_call.1} parent=5 // pred_check_branch
        %748 = sbr.rel (%p746) target = $region44
      $region43: #{tpu_custom_call.1} parent=5 // pred_region
        %s749 = ssub.s32 %s13, 2
        // Predicated region
        $region45: #{tpu_custom_call.1} parent=43 // pred_check
          %p750 = pneg %p131
        $region46: #{tpu_custom_call.1} parent=43 // pred_check_branch
          %752 = sbr.rel (%p750) target = $region48
        $region47: #{tpu_custom_call.1} parent=43 // pred_region
          %s753 = sand.u32 %s116, 1
          %s754 = scalar_lea.sflag [#allocation4], %s753
          %s755 = sand.u32 %s116, 1
          %s756 = smul.addr %s755, 8
          %s757 = scalar_lea.vmem [#allocation5], %s756
          %758 = dma.done %s754, 128
        $region48: #{tpu_custom_call.1} parent=43 // pred_fallthru
          _
      $region44: #{tpu_custom_call.1} parent=5 // pred_fallthru
        _
    $region6: #{tpu_custom_call.1} parent=1 // loop_footer
      %s17 = sadd.s32 1, %s13
    $region7: #{tpu_custom_call.1} parent=1 // loop_footer_branch
      %12 = sbr.rel target = $region3
    $region8: #{tpu_custom_call.1} parent=1 // loop_exit
      _
    %759 = vsyncpa [#allocation3], 1
    %s760 = scalar_lea.sflag [#allocation3], 1
    %761 = vsyncpa %s760, 1
    %762 = vsyncpa [#allocation4], 1
    %s763 = scalar_lea.sflag [#allocation4], 1
    %764 = vsyncpa %s763, 1

</llo_original>
